<compile_context>
chip_gen: v6e
topology: v6e:2x2x1
jax: 0.10.0
libtpu: 0.0.40
codegen_flags: <defaults>
</compile_context>

<pallas_src>
import functools
import math

import jax
import jax.numpy as jnp
from jax.experimental import pallas as pl
from jax.experimental.pallas import tpu as pltpu

HIDDEN = 128


def _choose_bags_per_tile(n_bags, n_inst, target_rows):
    """Whole bags per grid step, aiming at an MXU-filling row count.

    Multi-tile blocks must satisfy:
      * pooled out block (bpt, 128)       : bpt % 8 == 0
      * bf16 x block (bpt*n_inst, F_pad)  : (bpt*n_inst) % 16 == 0
    """
    # TODO(synk): if a single bag ever exceeds VMEM (huge N*F), add an instance-axis
    # grid with a running-max accumulator; MIL benchmark bags are small.
    bpt = max(1, target_rows // max(n_inst, 1))
    if bpt >= n_bags:
        return n_bags                              # single tile: blocks == full dims
    r2 = 16 // math.gcd(n_inst, 16)                # bpt multiple needed for bf16 rows
    need = 8 * r2 // math.gcd(8, r2)               # lcm(8, r2)
    bpt = max(need, (bpt // need) * need)
    if bpt >= n_bags:
        return n_bags
    return bpt


# ---------------------------------------------------------------------------
# Fused kernel: batched 3-layer MLP (bf16 MXU, f32 accumulate) + per-bag max-pool
# residual sum, with the GraphConvolution(128 -> 1) + sigmoid epilogue fused on
# the last grid step (adj streamed in from HBM via manual DMA just in time).
# ---------------------------------------------------------------------------
def _fused_kernel(x_ref, w1_ref, b1_ref, w2_ref, b2_ref, w3_ref, b3_ref,
                  adj_hbm, wg_ref, bg_ref,
                  out_ref, pooled_ref,
                  pooled_acc, adj_vmem, adj_sem,
                  *, bags_per_tile, n_inst):
    t = pl.program_id(0)
    nt = pl.num_programs(0)

    # Kick off the adj HBM->VMEM copy one step before the epilogue so the DMA
    # overlaps the final tile's matmuls (adj never occupies VMEM for the whole
    # kernel lifetime -- matters most under v7x's 64 MiB VMEM).
    @pl.when(t == jnp.maximum(nt - 2, 0))
    def _():
        pltpu.make_async_copy(adj_hbm, adj_vmem, adj_sem).start()

    def bag_max(h):
        return jnp.max(h.reshape(bags_per_tile, n_inst, HIDDEN), axis=1)

    # ---- 3-layer MLP over all rows (bags_per_tile * n_inst) of this tile.
    # Pooling is interleaved so at most one (R,128) f32 activation slab is live.
    h = jnp.maximum(
        jnp.dot(x_ref[...], w1_ref[...], preferred_element_type=jnp.float32)
        + b1_ref[...], 0.0)                                            # (R,128) f32
    pooled = bag_max(h)
    h = jnp.maximum(
        jnp.dot(h.astype(jnp.bfloat16), w2_ref[...],
                preferred_element_type=jnp.float32) + b2_ref[...], 0.0)
    pooled = pooled + bag_max(h)
    h = jnp.maximum(
        jnp.dot(h.astype(jnp.bfloat16), w3_ref[...],
                preferred_element_type=jnp.float32) + b3_ref[...], 0.0)
    pooled = pooled + bag_max(h)                                       # (bpt,128) f32
    # TODO(synk): Dropout(p=0.5) before pooling is identity in eval mode.

    # Lane/sublane-dense per-tile writeback of the embedding ...
    pooled_ref[...] = pooled
    # ... and 8-aligned accumulation into the persistent scratch the epilogue reads.
    row0 = pl.multiple_of(t * bags_per_tile, 8)
    pooled_acc[pl.ds(row0, bags_per_tile), :] = pooled

    # ---- fused GraphConvolution(128 -> 1) + sigmoid on the last grid step.
    # TODO(synk): on v7x, split this epilogue into its own tiny call and mark the
    # bag-tile axis "parallel" to shard the MLP loop across both TensorCores.
    @pl.when(t == nt - 1)
    def _():
        bg = bg_ref[0, 0]                                              # SMEM scalar
        pltpu.make_async_copy(adj_hbm, adj_vmem, adj_sem).wait()
        # adj @ (pooled @ Wg) == (adj @ pooled) @ Wg ; keep intermediates lane-dense.
        ap = jnp.dot(adj_vmem[...], pooled_acc[...],
                     preferred_element_type=jnp.float32)               # (Bp,128) MXU
        logits = jnp.sum(ap * wg_ref[...], axis=-1, keepdims=True)     # VPU + lane red.
        out_ref[...] = jax.nn.sigmoid(logits + bg)                     # (Bp, 1)


def res_pool_gcn_pallas(x, adj, params, *, target_rows=2048):
    B, N, F = x.shape
    f_pad = ((F + 127) // 128) * 128               # lane-aligned contraction dim

    bpt = _choose_bags_per_tile(B, N, target_rows)
    num_tiles = -(-B // bpt)
    b_pad = num_tiles * bpt                        # bag-padded batch
    tile_rows = bpt * N

    # bf16 input stream (halves HBM bytes of the dominant stream), lane-padded F,
    # bag-padded B so every tile is uniform and (8,128)/bf16 aligned.
    xb = x.astype(jnp.bfloat16)
    w1 = params["w1"]
    if f_pad != F:
        xb = jnp.pad(xb, ((0, 0), (0, 0), (0, f_pad - F)))
        w1 = jnp.pad(w1, ((0, f_pad - F), (0, 0)))
    if b_pad != B:
        xb = jnp.pad(xb, ((0, b_pad - B), (0, 0), (0, 0)))
        adj_p = jnp.pad(adj.astype(jnp.float32), ((0, b_pad - B), (0, b_pad - B)))
    else:
        adj_p = adj.astype(jnp.float32)
    x_flat = xb.reshape(b_pad * N, f_pad)
    w1 = w1.astype(jnp.bfloat16)
    w2 = params["w2"].astype(jnp.bfloat16)
    w3 = params["w3"].astype(jnp.bfloat16)
    wg_row = params["wg"].reshape(1, HIDDEN).astype(jnp.float32)       # lane-dense row
    bg = params["bg"].reshape(1, 1).astype(jnp.float32)

    # VMEM budget: double-buffered streams + persistent scratch, with headroom.
    stream_bytes = (tile_rows * f_pad * 2                    # x tile (bf16)
                    + (f_pad + 2 * HIDDEN) * HIDDEN * 2      # W1..W3 (bf16)
                    + 4 * HIDDEN * 4                         # b1..b3, Wg (f32)
                    + (b_pad + bpt * HIDDEN) * 4)            # out + pooled blocks
    scratch_bytes = (b_pad * HIDDEN + b_pad * b_pad) * 4
    vmem_limit = max(32 << 20,
                     min(int(2 * stream_bytes * 1.5) + scratch_bytes + (4 << 20),
                         64 << 20))

    flops = (2 * b_pad * N * (f_pad + 2 * HIDDEN) * HIDDEN            # MLP matmuls
             + 2 * b_pad * b_pad * HIDDEN + 2 * b_pad * HIDDEN)       # GCN epilogue
    bytes_accessed = (x_flat.size * 2 + (f_pad + 2 * HIDDEN) * HIDDEN * 2
                      + 4 * HIDDEN * 4 + b_pad * b_pad * 4
                      + b_pad * (HIDDEN + 1) * 4)
    cost = pl.CostEstimate(flops=int(flops), transcendentals=int(b_pad),
                           bytes_accessed=int(bytes_accessed))

    kernel = functools.partial(_fused_kernel, bags_per_tile=bpt, n_inst=N)
    out, pooled = pl.pallas_call(
        kernel,
        out_shape=(jax.ShapeDtypeStruct((b_pad, 1), jnp.float32),
                   jax.ShapeDtypeStruct((b_pad, HIDDEN), jnp.float32)),
        grid_spec=pltpu.PrefetchScalarGridSpec(
            num_scalar_prefetch=0,
            grid=(num_tiles,),
            in_specs=[
                pl.BlockSpec((tile_rows, f_pad), lambda t: (t, 0)),    # x rows (bf16)
                pl.BlockSpec((f_pad, HIDDEN), lambda t: (0, 0)),       # W1 (bf16)
                pl.BlockSpec((1, HIDDEN), lambda t: (0, 0)),           # b1
                pl.BlockSpec((HIDDEN, HIDDEN), lambda t: (0, 0)),      # W2 (bf16)
                pl.BlockSpec((1, HIDDEN), lambda t: (0, 0)),           # b2
                pl.BlockSpec((HIDDEN, HIDDEN), lambda t: (0, 0)),      # W3 (bf16)
                pl.BlockSpec((1, HIDDEN), lambda t: (0, 0)),           # b3
                pl.BlockSpec(memory_space=pl.ANY),                     # adj stays in HBM
                pl.BlockSpec((1, HIDDEN), lambda t: (0, 0)),           # Wg (row)
                pl.BlockSpec(memory_space=pltpu.MemorySpace.SMEM),     # bg scalar
            ],
            out_specs=[
                pl.BlockSpec((b_pad, 1), lambda t: (0, 0)),            # sigmoid(gcn)
                pl.BlockSpec((bpt, HIDDEN), lambda t: (t, 0)),         # embedding tile
            ],
            scratch_shapes=[
                pltpu.VMEM((b_pad, HIDDEN), jnp.float32),              # pooled accum
                pltpu.VMEM((b_pad, b_pad), jnp.float32),               # adj landing buf
                pltpu.SemaphoreType.DMA,                               # adj copy sem
            ],
        ),
        # The bag-tile axis carries the pooled accumulator + last-step epilogue,
        # so it must be "arbitrary".
        compiler_params=pltpu.CompilerParams(
            dimension_semantics=("arbitrary",),
            vmem_limit_bytes=int(vmem_limit)),
        cost_estimate=cost,
    )(x_flat, w1, params["b1"], w2, params["b2"], w3, params["b3"],
      adj_p, wg_row, bg)
    return out[:B], pooled[:B]


# ---------------------------------------------------------------------------
# Parameter init (mimicking the PyTorch reset_parameters):
#   nn.Linear: U(-1/sqrt(fan_in), 1/sqrt(fan_in)); GraphConvolution likewise.
# ---------------------------------------------------------------------------
def init_params(key, in_features):
    keys = jax.random.split(key, 8)

    def uni(k, shape, bound):
        return jax.random.uniform(k, shape, jnp.float32, -bound, bound)

    p = {}
    b1 = 1.0 / math.sqrt(in_features)
    p["w1"] = uni(keys[0], (in_features, HIDDEN), b1)   # stored as (in, out)
    p["b1"] = uni(keys[1], (1, HIDDEN), b1)
    b2 = 1.0 / math.sqrt(HIDDEN)
    p["w2"] = uni(keys[2], (HIDDEN, HIDDEN), b2)
    p["b2"] = uni(keys[3], (1, HIDDEN), b2)
    p["w3"] = uni(keys[4], (HIDDEN, HIDDEN), b2)
    p["b3"] = uni(keys[5], (1, HIDDEN), b2)
    bg = 1.0 / math.sqrt(HIDDEN)
    p["wg"] = uni(keys[6], (HIDDEN, 1), bg)
    p["bg"] = uni(keys[7], (1, 1), bg)
    return p


@functools.partial(jax.jit, static_argnames=("target_rows",))
def res_pool_gcn_forward(x, adj, params, *, target_rows=2048):
    return res_pool_gcn_pallas(x, adj, params, target_rows=target_rows)


# Pure-JAX reference.  matmul_dtype=bf16 matches the kernel's MXU numerics;
# matmul_dtype=f32 is the exact original-module math (used as a loose sanity check).
def reference_forward(x, adj, p, matmul_dtype=jnp.bfloat16):
    c = lambda a: a.astype(matmul_dtype)
    h1 = jax.nn.relu(jnp.einsum("bnf,fh->bnh", c(x), c(p["w1"]),
                                preferred_element_type=jnp.float32) + p["b1"])
    h2 = jax.nn.relu(jnp.einsum("bnf,fh->bnh", c(h1), c(p["w2"]),
                                preferred_element_type=jnp.float32) + p["b2"])
    h3 = jax.nn.relu(jnp.einsum("bnf,fh->bnh", c(h2), c(p["w3"]),
                                preferred_element_type=jnp.float32) + p["b3"])
    pooled = h1.max(axis=1) + h2.max(axis=1) + h3.max(axis=1)
    out = jax.nn.sigmoid(adj @ (pooled @ p["wg"]) + p["bg"])
    return out, pooled


if __name__ == "__main__":
    key = jax.random.PRNGKey(0)
    k_param, k_x, k_adj, k_x2, k_adj2 = jax.random.split(key, 5)

    # ---- main test: 2 bags, 8 instances each, 200 input features (single tile).
    B, N, F = 2, 8, 200
    params = init_params(k_param, F)
    x = jax.random.normal(k_x, (B, N, F), jnp.float32)
    adj = jax.random.uniform(k_adj, (B, B), jnp.float32)

    out, embedding = res_pool_gcn_forward(x, adj, params, target_rows=2048)
    out = jax.block_until_ready(out)
    embedding = jax.block_until_ready(embedding)
    assert out.shape == (B, 1) and embedding.shape == (B, HIDDEN)

    ref_out, ref_emb = reference_forward(x, adj, params)                # bf16-matched
    f32_out, f32_emb = reference_forward(x, adj, params, jnp.float32)   # original math
    assert jnp.allclose(embedding, ref_emb, atol=2e-3, rtol=2e-3)
    assert jnp.allclose(out, ref_out, atol=2e-3, rtol=2e-3)
    assert jnp.allclose(embedding, f32_emb, atol=1e-1, rtol=1e-1)
    assert jnp.allclose(out, f32_out, atol=5e-2, rtol=5e-2)

    # ---- multi-tile test: exercises several grid steps, bag padding (20 -> 24),
    # pipelined pooled writeback and the early adj prefetch + last-step epilogue.
    B2, N2 = 20, 8
    x2 = jax.random.normal(k_x2, (B2, N2, F), jnp.float32)
    adj2 = jax.random.uniform(k_adj2, (B2, B2), jnp.float32)
    out2, emb2 = res_pool_gcn_forward(x2, adj2, params, target_rows=64)
    out2 = jax.block_until_ready(out2)
    emb2 = jax.block_until_ready(emb2)
    ref_out2, ref_emb2 = reference_forward(x2, adj2, params)
    assert out2.shape == (B2, 1) and emb2.shape == (B2, HIDDEN)
    assert jnp.allclose(emb2, ref_emb2, atol=2e-3, rtol=2e-3)
    assert jnp.allclose(out2, ref_out2, atol=2e-3, rtol=2e-3)

    print("KERNEL_OK")
</pallas_src>

<mosaic_0001>
module attributes {stable_mosaic.version = 11 : i64} {
  func.func @_fused_kernel(%arg0: i32, %arg1: memref<16x256xbf16, #tpu.memory_space<vmem>>, %arg2: memref<256x128xbf16, #tpu.memory_space<vmem>>, %arg3: memref<1x128xf32, #tpu.memory_space<vmem>>, %arg4: memref<128x128xbf16, #tpu.memory_space<vmem>>, %arg5: memref<1x128xf32, #tpu.memory_space<vmem>>, %arg6: memref<128x128xbf16, #tpu.memory_space<vmem>>, %arg7: memref<1x128xf32, #tpu.memory_space<vmem>>, %arg8: memref<2x2xf32, #tpu.memory_space<any>>, %arg9: memref<1x128xf32, #tpu.memory_space<vmem>>, %arg10: memref<1x1xf32, #tpu.memory_space<smem>>, %arg11: memref<2x1xf32, #tpu.memory_space<vmem>>, %arg12: memref<2x128xf32, #tpu.memory_space<vmem>>, %arg13: memref<2x128xf32, #tpu.memory_space<vmem>>, %arg14: memref<2x2xf32, #tpu.memory_space<vmem>>, %arg15: memref<!tpu.dma_semaphore, #tpu.memory_space<semaphore_mem>>) attributes {dimension_semantics = [#tpu.dimension_semantics<arbitrary>], iteration_bounds = array<i64: 1>, scalar_prefetch = 0 : i64, scratch_operands = 3 : i64, tpu.core_type = #tpu.core_type<tc>, window_params = [{transform_indices = @transform_0, window_bounds = array<i64: 16, 256>}, {pipeline_mode = #tpu.pipeline_mode<synchronous>, transform_indices = @transform_1, window_bounds = array<i64: 256, 128>}, {pipeline_mode = #tpu.pipeline_mode<synchronous>, transform_indices = @transform_2, window_bounds = array<i64: 1, 128>}, {pipeline_mode = #tpu.pipeline_mode<synchronous>, transform_indices = @transform_3, window_bounds = array<i64: 128, 128>}, {pipeline_mode = #tpu.pipeline_mode<synchronous>, transform_indices = @transform_4, window_bounds = array<i64: 1, 128>}, {pipeline_mode = #tpu.pipeline_mode<synchronous>, transform_indices = @transform_5, window_bounds = array<i64: 128, 128>}, {pipeline_mode = #tpu.pipeline_mode<synchronous>, transform_indices = @transform_6, window_bounds = array<i64: 1, 128>}, {}, {pipeline_mode = #tpu.pipeline_mode<synchronous>, transform_indices = @transform_8, window_bounds = array<i64: 1, 128>}, {transform_indices = @transform_9, window_bounds = array<i64: 1, 1>}, {pipeline_mode = #tpu.pipeline_mode<synchronous>, transform_indices = @transform_10, window_bounds = array<i64: 2, 1>}, {transform_indices = @transform_11, window_bounds = array<i64: 2, 128>}]} {
    %c-1_i32 = arith.constant -1 : i32
    %c0_i32 = arith.constant 0 : i32
    %0 = arith.maxsi %c-1_i32, %c0_i32 : i32
    %1 = arith.cmpi eq, %arg0, %0 : i32
    %2 = arith.extui %1 : i1 to i32
    %c0_i32_0 = arith.constant 0 : i32
    %3 = arith.cmpi ne, %2, %c0_i32_0 : i32
    scf.if %3 {
      tpu.enqueue_dma source(%arg8 : memref<2x2xf32, #tpu.memory_space<any>>) target(%arg14 : memref<2x2xf32, #tpu.memory_space<vmem>>) target_semaphore(%arg15 : memref<!tpu.dma_semaphore, #tpu.memory_space<semaphore_mem>>)
    } else {
    }
    %c0 = arith.constant 0 : index
    %c0_1 = arith.constant 0 : index
    %4 = vector.load %arg1[%c0, %c0_1] : memref<16x256xbf16, #tpu.memory_space<vmem>>, vector<16x256xbf16>
    %c0_2 = arith.constant 0 : index
    %c0_3 = arith.constant 0 : index
    %5 = vector.load %arg2[%c0_2, %c0_3] : memref<256x128xbf16, #tpu.memory_space<vmem>>, vector<256x128xbf16>
    %cst = arith.constant dense<0.000000e+00> : vector<16x128xf32>
    %6 = tpu.matmul %4, %5, %cst {dimension_numbers = #tpu.dot_dimension_numbers<[1], [0], [0], [1], [0, 0, 1, 1], [], []>} : vector<16x256xbf16>, vector<256x128xbf16>, vector<16x128xf32> -> vector<16x128xf32>
    %c0_4 = arith.constant 0 : index
    %c0_5 = arith.constant 0 : index
    %7 = vector.load %arg3[%c0_4, %c0_5] : memref<1x128xf32, #tpu.memory_space<vmem>>, vector<1x128xf32>
    %8 = vector.broadcast %7 : vector<1x128xf32> to vector<16x128xf32>
    %9 = arith.addf %6, %8 : vector<16x128xf32>
    %cst_6 = arith.constant 0.000000e+00 : f32
    %10 = vector.broadcast %cst_6 : f32 to vector<16x128xf32>
    %11 = arith.maximumf %9, %10 : vector<16x128xf32>
    %12 = vector.shape_cast %11 : vector<16x128xf32> to vector<2x8x128xf32>
    %cst_7 = arith.constant dense<0xFF800000> : vector<2x128xf32>
    %13 = vector.multi_reduction <maximumf>, %12, %cst_7 [1] : vector<2x8x128xf32> to vector<2x128xf32>
    %14 = arith.truncf %11 : vector<16x128xf32> to vector<16x128xbf16>
    %c0_8 = arith.constant 0 : index
    %c0_9 = arith.constant 0 : index
    %15 = vector.load %arg4[%c0_8, %c0_9] : memref<128x128xbf16, #tpu.memory_space<vmem>>, vector<128x128xbf16>
    %cst_10 = arith.constant dense<0.000000e+00> : vector<16x128xf32>
    %16 = tpu.matmul %14, %15, %cst_10 {dimension_numbers = #tpu.dot_dimension_numbers<[1], [0], [0], [1], [0, 0, 1, 1], [], []>} : vector<16x128xbf16>, vector<128x128xbf16>, vector<16x128xf32> -> vector<16x128xf32>
    %c0_11 = arith.constant 0 : index
    %c0_12 = arith.constant 0 : index
    %17 = vector.load %arg5[%c0_11, %c0_12] : memref<1x128xf32, #tpu.memory_space<vmem>>, vector<1x128xf32>
    %18 = vector.broadcast %17 : vector<1x128xf32> to vector<16x128xf32>
    %19 = arith.addf %16, %18 : vector<16x128xf32>
    %cst_13 = arith.constant 0.000000e+00 : f32
    %20 = vector.broadcast %cst_13 : f32 to vector<16x128xf32>
    %21 = arith.maximumf %19, %20 : vector<16x128xf32>
    %22 = vector.shape_cast %21 : vector<16x128xf32> to vector<2x8x128xf32>
    %cst_14 = arith.constant dense<0xFF800000> : vector<2x128xf32>
    %23 = vector.multi_reduction <maximumf>, %22, %cst_14 [1] : vector<2x8x128xf32> to vector<2x128xf32>
    %24 = arith.addf %13, %23 : vector<2x128xf32>
    %25 = arith.truncf %21 : vector<16x128xf32> to vector<16x128xbf16>
    %c0_15 = arith.constant 0 : index
    %c0_16 = arith.constant 0 : index
    %26 = vector.load %arg6[%c0_15, %c0_16] : memref<128x128xbf16, #tpu.memory_space<vmem>>, vector<128x128xbf16>
    %cst_17 = arith.constant dense<0.000000e+00> : vector<16x128xf32>
    %27 = tpu.matmul %25, %26, %cst_17 {dimension_numbers = #tpu.dot_dimension_numbers<[1], [0], [0], [1], [0, 0, 1, 1], [], []>} : vector<16x128xbf16>, vector<128x128xbf16>, vector<16x128xf32> -> vector<16x128xf32>
    %c0_18 = arith.constant 0 : index
    %c0_19 = arith.constant 0 : index
    %28 = vector.load %arg7[%c0_18, %c0_19] : memref<1x128xf32, #tpu.memory_space<vmem>>, vector<1x128xf32>
    %29 = vector.broadcast %28 : vector<1x128xf32> to vector<16x128xf32>
    %30 = arith.addf %27, %29 : vector<16x128xf32>
    %cst_20 = arith.constant 0.000000e+00 : f32
    %31 = vector.broadcast %cst_20 : f32 to vector<16x128xf32>
    %32 = arith.maximumf %30, %31 : vector<16x128xf32>
    %33 = vector.shape_cast %32 : vector<16x128xf32> to vector<2x8x128xf32>
    %cst_21 = arith.constant dense<0xFF800000> : vector<2x128xf32>
    %34 = vector.multi_reduction <maximumf>, %33, %cst_21 [1] : vector<2x8x128xf32> to vector<2x128xf32>
    %35 = arith.addf %24, %34 : vector<2x128xf32>
    %c0_22 = arith.constant 0 : index
    %c0_23 = arith.constant 0 : index
    %36 = vector.load %arg12[%c0_22, %c0_23] : memref<2x128xf32, #tpu.memory_space<vmem>>, vector<2x128xf32>
    tpu.vector_store %arg12[%c0_22, %c0_23], %35 {strides = array<i32>} : memref<2x128xf32, #tpu.memory_space<vmem>>, vector<2x128xf32>,
    %c2_i32 = arith.constant 2 : i32
    %37 = arith.muli %arg0, %c2_i32 : i32
    %38 = tpu.assume_multiple %37, 8 : i32
    %39 = arith.index_cast %38 : i32 to index
    %c0_24 = arith.constant 0 : index
    %40 = vector.load %arg13[%39, %c0_24] : memref<2x128xf32, #tpu.memory_space<vmem>>, vector<2x128xf32>
    tpu.vector_store %arg13[%39, %c0_24], %35 {strides = array<i32>} : memref<2x128xf32, #tpu.memory_space<vmem>>, vector<2x128xf32>,
    %c0_i32_25 = arith.constant 0 : i32
    %41 = arith.cmpi eq, %arg0, %c0_i32_25 : i32
    %42 = arith.extui %41 : i1 to i32
    %c0_i32_26 = arith.constant 0 : i32
    %43 = arith.cmpi ne, %42, %c0_i32_26 : i32
    scf.if %43 {
      %c0_27 = arith.constant 0 : index
      %c0_28 = arith.constant 0 : index
      %44 = memref.load %arg10[%c0_27, %c0_28] : memref<1x1xf32, #tpu.memory_space<smem>>
      tpu.wait_dma2 semaphore(%arg15 : memref<!tpu.dma_semaphore, #tpu.memory_space<semaphore_mem>>) src(%arg8 : memref<2x2xf32, #tpu.memory_space<any>>) dst(%arg14 : memref<2x2xf32, #tpu.memory_space<vmem>>)
      %c0_29 = arith.constant 0 : index
      %c0_30 = arith.constant 0 : index
      %45 = vector.load %arg14[%c0_29, %c0_30] : memref<2x2xf32, #tpu.memory_space<vmem>>, vector<2x2xf32>
      %c0_31 = arith.constant 0 : index
      %c0_32 = arith.constant 0 : index
      %46 = vector.load %arg13[%c0_31, %c0_32] : memref<2x128xf32, #tpu.memory_space<vmem>>, vector<2x128xf32>
      %cst_33 = arith.constant dense<0.000000e+00> : vector<2x128xf32>
      %47 = tpu.matmul %45, %46, %cst_33 {dimension_numbers = #tpu.dot_dimension_numbers<[1], [0], [0], [1], [0, 0, 1, 1], [], []>} : vector<2x2xf32>, vector<2x128xf32>, vector<2x128xf32> -> vector<2x128xf32>
      %c0_34 = arith.constant 0 : index
      %c0_35 = arith.constant 0 : index
      %48 = vector.load %arg9[%c0_34, %c0_35] : memref<1x128xf32, #tpu.memory_space<vmem>>, vector<1x128xf32>
      %49 = vector.broadcast %48 : vector<1x128xf32> to vector<2x128xf32>
      %50 = arith.mulf %47, %49 : vector<2x128xf32>
      %cst_36 = arith.constant dense<0.000000e+00> : vector<2xf32>
      %51 = vector.multi_reduction <add>, %50, %cst_36 [1] : vector<2x128xf32> to vector<2xf32>
      %52 = vector.shape_cast %51 : vector<2xf32> to vector<2x1xf32>
      %53 = vector.broadcast %44 : f32 to vector<2x1xf32>
      %54 = arith.addf %52, %53 : vector<2x1xf32>
      %55 = arith.negf %54 : vector<2x1xf32>
      %56 = math.exp %55 : vector<2x1xf32>
      %cst_37 = arith.constant 1.000000e+00 : f32
      %57 = vector.broadcast %cst_37 : f32 to vector<2x1xf32>
      %58 = arith.addf %57, %56 : vector<2x1xf32>
      %59 = arith.divf %57, %58 : vector<2x1xf32>
      %c0_38 = arith.constant 0 : index
      %c0_39 = arith.constant 0 : index
      %60 = vector.load %arg11[%c0_38, %c0_39] : memref<2x1xf32, #tpu.memory_space<vmem>>, vector<2x1xf32>
      tpu.vector_store %arg11[%c0_38, %c0_39], %59 {strides = array<i32>} : memref<2x1xf32, #tpu.memory_space<vmem>>, vector<2x1xf32>,
    } else {
    }
    return
  }
  func.func @transform_0(%arg0: i32) -> (i32, i32) {
    %c0_i32 = arith.constant 0 : i32
    %c0_i32_0 = arith.constant 0 : i32
    return %arg0, %c0_i32 : i32, i32
  }
  func.func @transform_1(%arg0: i32) -> (i32, i32) {
    %c0_i32 = arith.constant 0 : i32
    %c0_i32_0 = arith.constant 0 : i32
    %c0_i32_1 = arith.constant 0 : i32
    return %c0_i32, %c0_i32_0 : i32, i32
  }
  func.func @transform_2(%arg0: i32) -> (i32, i32) {
    %c0_i32 = arith.constant 0 : i32
    %c0_i32_0 = arith.constant 0 : i32
    %c0_i32_1 = arith.constant 0 : i32
    return %c0_i32, %c0_i32_0 : i32, i32
  }
  func.func @transform_3(%arg0: i32) -> (i32, i32) {
    %c0_i32 = arith.constant 0 : i32
    %c0_i32_0 = arith.constant 0 : i32
    %c0_i32_1 = arith.constant 0 : i32
    return %c0_i32, %c0_i32_0 : i32, i32
  }
  func.func @transform_4(%arg0: i32) -> (i32, i32) {
    %c0_i32 = arith.constant 0 : i32
    %c0_i32_0 = arith.constant 0 : i32
    %c0_i32_1 = arith.constant 0 : i32
    return %c0_i32, %c0_i32_0 : i32, i32
  }
  func.func @transform_5(%arg0: i32) -> (i32, i32) {
    %c0_i32 = arith.constant 0 : i32
    %c0_i32_0 = arith.constant 0 : i32
    %c0_i32_1 = arith.constant 0 : i32
    return %c0_i32, %c0_i32_0 : i32, i32
  }
  func.func @transform_6(%arg0: i32) -> (i32, i32) {
    %c0_i32 = arith.constant 0 : i32
    %c0_i32_0 = arith.constant 0 : i32
    %c0_i32_1 = arith.constant 0 : i32
    return %c0_i32, %c0_i32_0 : i32, i32
  }
  func.func @transform_8(%arg0: i32) -> (i32, i32) {
    %c0_i32 = arith.constant 0 : i32
    %c0_i32_0 = arith.constant 0 : i32
    %c0_i32_1 = arith.constant 0 : i32
    return %c0_i32, %c0_i32_0 : i32, i32
  }
  func.func @transform_9(%arg0: i32) -> (i32, i32) {
    %c0_i32 = arith.constant 0 : i32
    %c0_i32_0 = arith.constant 0 : i32
    %c0_i32_1 = arith.constant 0 : i32
    return %c0_i32, %c0_i32_0 : i32, i32
  }
  func.func @transform_10(%arg0: i32) -> (i32, i32) {
    %c0_i32 = arith.constant 0 : i32
    %c0_i32_0 = arith.constant 0 : i32
    %c0_i32_1 = arith.constant 0 : i32
    return %c0_i32, %c0_i32_0 : i32, i32
  }
  func.func @transform_11(%arg0: i32) -> (i32, i32) {
    %c0_i32 = arith.constant 0 : i32
    %c0_i32_0 = arith.constant 0 : i32
    return %arg0, %c0_i32 : i32, i32
  }
}

</mosaic_0001>

<llo_original>
// kernel: res_pool_gcn_forward.1
$region0: #{res_pool_gcn_forward.1}
  #allocation0 [shape = 'u32[]', space=smem, size = 0x4, offset = 0x4, fixed_abs, tag = 'smem constant byte address 0x4 - core index']
  #allocation1 [shape = 'u32[144,128]{1,0:T(1,128)}', space=vmem, size = 0x12000, scoped, tag = 'internal scratch']
  #allocation2 [shape = 'f32[2,128]{1,0:T(2,128)}', space=vmem, size = 0x400, scoped, tag = 'scratch operand']
  #allocation3 [shape = 'f32[2,2]{1,0:T(2,128)}', space=vmem, size = 0x400, scoped, tag = 'scratch operand']
  #allocation4 [shape = 's32[1]{0}', space=sflag, size = 0x4, scoped, tag = 'scratch operand']
  #allocation5 [shape = 'f32[1,1]{1,0:T(1,128)S(6)}', space=smem, size = 0x200, scoped, tag = 'scoped memory for res_pool_gcn_forward.1']
  #allocation8 [shape = 's32[]', space=sflag, size = 0x4, offset = 0, fixed_abs, tag = 'sflag constant byte address 0x0 - dummy sync flag']
  %s0 = inlined_call_operand.vmem [shape: bf16[16,256], index: 0, kind: input, shape index: {}]
  %s1 = inlined_call_operand.vmem [shape: bf16[256,128], index: 1, kind: input, shape index: {}]
  %s2 = inlined_call_operand.vmem [shape: f32[1,128], index: 2, kind: input, shape index: {}]
  %s3 = inlined_call_operand.vmem [shape: bf16[128,128], index: 3, kind: input, shape index: {}]
  %s4 = inlined_call_operand.vmem [shape: f32[1,128], index: 4, kind: input, shape index: {}]
  %s5 = inlined_call_operand.vmem [shape: bf16[128,128], index: 5, kind: input, shape index: {}]
  %s6 = inlined_call_operand.vmem [shape: f32[1,128], index: 6, kind: input, shape index: {}]
  %s7 = inlined_call_operand.vmem [shape: f32[2,2], index: 7, kind: input, shape index: {}]
  %s8 = inlined_call_operand.vmem [shape: f32[1,128], index: 8, kind: input, shape index: {}]
  %s9 = inlined_call_operand.<no memory space> [shape: f32[1,1], index: 9, kind: input, shape index: {}]
  %s10 = inlined_call_operand.vmem [shape: f32[2,1], index: 10, kind: output, shape index: {0}]
  %s11 = inlined_call_operand.hbm [shape: f32[2,128], index: 11, kind: output, shape index: {1}]
  %12 = xla_tuple %s10, %s11
  %s13 = sld [smem:[#allocation0]]
  $region92: #{res_pool_gcn_forward.1} parent=0
    _
  %s15 = ssub.s32 1, %s13
  %s16 = scalar_select 0, %s15, %s13
  %17 = sst [smem:[#allocation5]] %s9
  $region1: #{res_pool_gcn_forward.1} parent=0
    #allocation6 [shape = 'u8[1024]{0}', space=vmem, size = 0x400, scoped, tag = 'output window, operand 1, single buffered']
    #allocation7 [shape = 's32[1]{0}', space=sflag, size = 0x4, scoped, tag = 'scoped memory for res_pool_gcn_forward.1']
    %18 = vsyncpa [#allocation7], 0
    // Predicated region
    $region2: #{res_pool_gcn_forward.1} parent=1 // pred_check
      _
    $region3: #{res_pool_gcn_forward.1} parent=1 // pred_check_branch
      %20 = sbr.rel (0) target = $region5
    $region4: #{res_pool_gcn_forward.1} parent=1 // pred_region
      _
    $region5: #{res_pool_gcn_forward.1} parent=1 // pred_fallthru
      _
    // Predicated region
    $region6: #{res_pool_gcn_forward.1} parent=1 // pred_check
      _
    $region7: #{res_pool_gcn_forward.1} parent=1 // pred_check_branch
      %22 = sbr.rel (0) target = $region9
    $region8: #{res_pool_gcn_forward.1} parent=1 // pred_region
      _
    $region9: #{res_pool_gcn_forward.1} parent=1 // pred_fallthru
      _
    // Predicated region
    $region10: #{res_pool_gcn_forward.1} parent=1 // pred_check
      _
    $region11: #{res_pool_gcn_forward.1} parent=1 // pred_check_branch
      %24 = sbr.rel (0) target = $region13
    $region12: #{res_pool_gcn_forward.1} parent=1 // pred_region
      _
    $region13: #{res_pool_gcn_forward.1} parent=1 // pred_fallthru
      _
    // Predicated region
    $region14: #{res_pool_gcn_forward.1} parent=1 // pred_check
      _
    $region15: #{res_pool_gcn_forward.1} parent=1 // pred_check_branch
      %26 = sbr.rel (0) target = $region17
    $region16: #{res_pool_gcn_forward.1} parent=1 // pred_region
      _
    $region17: #{res_pool_gcn_forward.1} parent=1 // pred_fallthru
      _
    // Predicated region
    $region18: #{res_pool_gcn_forward.1} parent=1 // pred_check
      _
    $region19: #{res_pool_gcn_forward.1} parent=1 // pred_check_branch
      %28 = sbr.rel (0) target = $region21
    $region20: #{res_pool_gcn_forward.1} parent=1 // pred_region
      _
    $region21: #{res_pool_gcn_forward.1} parent=1 // pred_fallthru
      _
    // Predicated region
    $region22: #{res_pool_gcn_forward.1} parent=1 // pred_check
      _
    $region23: #{res_pool_gcn_forward.1} parent=1 // pred_check_branch
      %30 = sbr.rel (0) target = $region25
    $region24: #{res_pool_gcn_forward.1} parent=1 // pred_region
      _
    $region25: #{res_pool_gcn_forward.1} parent=1 // pred_fallthru
      _
    // Predicated region
    $region26: #{res_pool_gcn_forward.1} parent=1 // pred_check
      _
    $region27: #{res_pool_gcn_forward.1} parent=1 // pred_check_branch
      %32 = sbr.rel (0) target = $region29
    $region28: #{res_pool_gcn_forward.1} parent=1 // pred_region
      _
    $region29: #{res_pool_gcn_forward.1} parent=1 // pred_fallthru
      _
    // Predicated region
    $region30: #{res_pool_gcn_forward.1} parent=1 // pred_check
      _
    $region31: #{res_pool_gcn_forward.1} parent=1 // pred_check_branch
      %34 = sbr.rel (0) target = $region33
    $region32: #{res_pool_gcn_forward.1} parent=1 // pred_region
      _
    $region33: #{res_pool_gcn_forward.1} parent=1 // pred_fallthru
      _
    // Predicated region
    $region34: #{res_pool_gcn_forward.1} parent=1 // pred_check
      _
    $region35: #{res_pool_gcn_forward.1} parent=1 // pred_check_branch
      %36 = sbr.rel (0) target = $region37
    $region36: #{res_pool_gcn_forward.1} parent=1 // pred_region
      _
    $region37: #{res_pool_gcn_forward.1} parent=1 // pred_fallthru
      _
    %p38 = scmp.eq.s32.totalorder 0, 0
    // Predicated region
    $region38: #{res_pool_gcn_forward.1} parent=1 // pred_check
      %p39 = pneg %p38
    $region39: #{res_pool_gcn_forward.1} parent=1 // pred_check_branch
      %41 = sbr.rel (%p39) target = $region41
    $region40: #{res_pool_gcn_forward.1} parent=1 // pred_region
      %p43 = scmp.lt.u32.totalorder 2, 8
      %p44 = pneg %p43
      // Predicated region
      $region42: #{res_pool_gcn_forward.1} parent=40 // pred_check
        _
      $region43: #{res_pool_gcn_forward.1} parent=40 // pred_check_branch
        %46 = sbr.rel (%p43) target = $region45
      $region44: #{res_pool_gcn_forward.1} parent=40 // pred_region
        %s62 = sand.u32 2, 7
        %p63 = scmp.eq.s32.totalorder %s62, 0
        %p64 = pneg %p63
        // Predicated region
        $region57: #{res_pool_gcn_forward.1} parent=44 // pred_check
          _
        $region58: #{res_pool_gcn_forward.1} parent=44 // pred_check_branch
          %66 = sbr.rel (%p63) target = $region60
        $region59: #{res_pool_gcn_forward.1} parent=44 // pred_region
          %s67 = sand.u32 2, 7
          %s68 = ssub.s32 2, %s67
          %s69 = scalar_lea.vmem %s7, %s68
          %s70 = ssub.s32 2, %s67
          %s71 = scalar_lea.vmem [#allocation3], %s70
          %s72 = sshll.u32 1, %s67
          %s73 = ssub.s32 %s72, 1
          loop: start=0, step=1, limit=1
          $region61: #{res_pool_gcn_forward.1} parent=59 // loop_pre_header
            _
          $region62: #{res_pool_gcn_forward.1} parent=59 // loop_header
            %s75 = sphi 0, %s79
            %p76 = scmp.ge.s32.totalorder %s75, 1
            %s80 = sphi %s69, %s69
            %s81 = sphi %s71, %s71
          $region63: #{res_pool_gcn_forward.1} parent=59 // loop_header_branch
            %78 = sbr.rel (%p76) target = $region67
          $region64: #{res_pool_gcn_forward.1} parent=59 // loop_body
            %v82 = vld [vmem:[%s80] sm:%s73]
            %83 = vst [vmem:[%s81] sm:%s73] %v82
          $region65: #{res_pool_gcn_forward.1} parent=59 // loop_footer
            %s79 = sadd.s32 1, %s75
          $region66: #{res_pool_gcn_forward.1} parent=59 // loop_footer_branch
            %74 = sbr.rel target = $region62
          $region67: #{res_pool_gcn_forward.1} parent=59 // loop_exit
            _
        $region60: #{res_pool_gcn_forward.1} parent=44 // pred_fallthru
          _
      $region45: #{res_pool_gcn_forward.1} parent=40 // pred_fallthru
        _
      // Predicated region
      $region46: #{res_pool_gcn_forward.1} parent=40 // pred_check
        %p47 = pneg %p43
      $region47: #{res_pool_gcn_forward.1} parent=40 // pred_check_branch
        %49 = sbr.rel (%p47) target = $region49
      $region48: #{res_pool_gcn_forward.1} parent=40 // pred_region
        %s50 = sshll.u32 1, 2
        %s51 = ssub.s32 %s50, 1
        loop: start=0, step=1, limit=1
        $region50: #{res_pool_gcn_forward.1} parent=48 // loop_pre_header
          _
        $region51: #{res_pool_gcn_forward.1} parent=48 // loop_header
          %s53 = sphi 0, %s57
          %p54 = scmp.ge.s32.totalorder %s53, 1
          %s58 = sphi %s7, %s7
          %s59 = sphi [#allocation3], [#allocation3]
        $region52: #{res_pool_gcn_forward.1} parent=48 // loop_header_branch
          %56 = sbr.rel (%p54) target = $region56
        $region53: #{res_pool_gcn_forward.1} parent=48 // loop_body
          %v60 = vld [vmem:[%s58] sm:%s51]
          %61 = vst [vmem:[%s59] sm:%s51] %v60
        $region54: #{res_pool_gcn_forward.1} parent=48 // loop_footer
          %s57 = sadd.s32 1, %s53
        $region55: #{res_pool_gcn_forward.1} parent=48 // loop_footer_branch
          %52 = sbr.rel target = $region51
        $region56: #{res_pool_gcn_forward.1} parent=48 // loop_exit
          _
      $region49: #{res_pool_gcn_forward.1} parent=40 // pred_fallthru
        _
      // Predicated region
      $region68: #{res_pool_gcn_forward.1} parent=40 // pred_check
        _
      $region69: #{res_pool_gcn_forward.1} parent=40 // pred_check_branch
        %86 = sbr.rel (0) target = $region71
      $region70: #{res_pool_gcn_forward.1} parent=40 // pred_region
        %87 = vsyncadd [#allocation4], 32
      $region71: #{res_pool_gcn_forward.1} parent=40 // pred_fallthru
        _
    $region41: #{res_pool_gcn_forward.1} parent=1 // pred_fallthru
      _
    %v88 = vld [vmem:[%s0] sm:$0xff]
    %v89 = vld [vmem:[%s0 + $0x8] sm:$0xff]
    %v90 = vld [vmem:[%s1] sm:$0xf]
    %v91 = vld [vmem:[%s1 + $0x4] sm:$0xf]
    %v92 = vld [vmem:[%s1 + $0x8] sm:$0xf]
    %v93 = vld [vmem:[%s1 + $0xc] sm:$0xf]
    %v94 = vld [vmem:[%s1 + $0x10] sm:$0xf]
    %v95 = vld [vmem:[%s1 + $0x14] sm:$0xf]
    %v96 = vld [vmem:[%s1 + $0x18] sm:$0xf]
    %v97 = vld [vmem:[%s1 + $0x1c] sm:$0xf]
    %v98 = vld [vmem:[%s1 + $0x20] sm:$0xf]
    %v99 = vld [vmem:[%s1 + $0x24] sm:$0xf]
    %v100 = vld [vmem:[%s1 + $0x28] sm:$0xf]
    %v101 = vld [vmem:[%s1 + $0x2c] sm:$0xf]
    %v102 = vld [vmem:[%s1 + $0x30] sm:$0xf]
    %v103 = vld [vmem:[%s1 + $0x34] sm:$0xf]
    %v104 = vld [vmem:[%s1 + $0x38] sm:$0xf]
    %v105 = vld [vmem:[%s1 + $0x3c] sm:$0xf]
    %v106 = vld [vmem:[%s1 + $0x40] sm:$0xf]
    %v107 = vld [vmem:[%s1 + $0x44] sm:$0xf]
    %v108 = vld [vmem:[%s1 + $0x48] sm:$0xf]
    %v109 = vld [vmem:[%s1 + $0x4c] sm:$0xf]
    %v110 = vld [vmem:[%s1 + $0x50] sm:$0xf]
    %v111 = vld [vmem:[%s1 + $0x54] sm:$0xf]
    %v112 = vld [vmem:[%s1 + $0x58] sm:$0xf]
    %v113 = vld [vmem:[%s1 + $0x5c] sm:$0xf]
    %v114 = vld [vmem:[%s1 + $0x60] sm:$0xf]
    %v115 = vld [vmem:[%s1 + $0x64] sm:$0xf]
    %v116 = vld [vmem:[%s1 + $0x68] sm:$0xf]
    %v117 = vld [vmem:[%s1 + $0x6c] sm:$0xf]
    %v118 = vld [vmem:[%s1 + $0x70] sm:$0xf]
    %v119 = vld [vmem:[%s1 + $0x74] sm:$0xf]
    %v120 = vld [vmem:[%s1 + $0x78] sm:$0xf]
    %v121 = vld [vmem:[%s1 + $0x7c] sm:$0xf]
    %v122 = vld [vmem:[%s2] sm:$0x1]
    %v124 = vlaneseq
    %v125 = vshrl.u32 %v124, 7
    %v126 = vsub.s32 0, %v125
    %v127 = vrot.slane %v122, %v126
    %v131 = vunpack.c.l.b16 %v88
    %v132 = vunpack.c.h.b16 %v88
    %v133 = vunpack.c.l.b16 %v89
    %v134 = vunpack.c.h.b16 %v89
    %v135 = vpack.c.b16 %v133, %v131
    %v136 = vpack.c.b16 %v134, %v132
    %v171 = vunpack.c.l.b16 %v90
    %v172 = vunpack.c.l.b16 %v91
    %v173 = vunpack.c.l.b16 %v92
    %v174 = vunpack.c.l.b16 %v93
    %v175 = vunpack.c.l.b16 %v94
    %v176 = vunpack.c.l.b16 %v95
    %v177 = vunpack.c.l.b16 %v96
    %v178 = vunpack.c.l.b16 %v97
    %v179 = vunpack.c.l.b16 %v98
    %v180 = vunpack.c.l.b16 %v99
    %v181 = vunpack.c.l.b16 %v100
    %v182 = vunpack.c.l.b16 %v101
    %v183 = vunpack.c.l.b16 %v102
    %v184 = vunpack.c.l.b16 %v103
    %v185 = vunpack.c.l.b16 %v104
    %v186 = vunpack.c.l.b16 %v105
    %v187 = vunpack.c.l.b16 %v106
    %v188 = vunpack.c.l.b16 %v107
    %v189 = vunpack.c.l.b16 %v108
    %v190 = vunpack.c.l.b16 %v109
    %v191 = vunpack.c.l.b16 %v110
    %v192 = vunpack.c.l.b16 %v111
    %v193 = vunpack.c.l.b16 %v112
    %v194 = vunpack.c.l.b16 %v113
    %v195 = vunpack.c.l.b16 %v114
    %v196 = vunpack.c.l.b16 %v115
    %v197 = vunpack.c.l.b16 %v116
    %v198 = vunpack.c.l.b16 %v117
    %v199 = vunpack.c.l.b16 %v118
    %v200 = vunpack.c.l.b16 %v119
    %v201 = vunpack.c.l.b16 %v120
    %v202 = vunpack.c.l.b16 %v121
    %v203 = vpack.c.b16 %v172, %v171
    %v204 = vpack.c.b16 %v174, %v173
    %v205 = vpack.c.b16 %v176, %v175
    %v206 = vpack.c.b16 %v178, %v177
    %v207 = vpack.c.b16 %v180, %v179
    %v208 = vpack.c.b16 %v182, %v181
    %v209 = vpack.c.b16 %v184, %v183
    %v210 = vpack.c.b16 %v186, %v185
    %v211 = vpack.c.b16 %v188, %v187
    %v212 = vpack.c.b16 %v190, %v189
    %v213 = vpack.c.b16 %v192, %v191
    %v214 = vpack.c.b16 %v194, %v193
    %v215 = vpack.c.b16 %v196, %v195
    %v216 = vpack.c.b16 %v198, %v197
    %v217 = vpack.c.b16 %v200, %v199
    %v218 = vpack.c.b16 %v202, %v201
    %235 = vmatprep.subr.bf16.mxu0 0
    %236 = vmatpush1.bf16.msra.mxu0 %v210
    %237 = vmatprep.subr.bf16.mxu0 0
    %238 = vmatpush1.bf16.msra.mxu0 %v209
    %239 = vmatprep.subr.bf16.mxu0 0
    %240 = vmatpush1.bf16.msra.mxu0 %v208
    %241 = vmatprep.subr.bf16.mxu0 0
    %242 = vmatpush1.bf16.msra.mxu0 %v207
    %243 = vmatprep.subr.bf16.mxu0 0
    %244 = vmatpush1.bf16.msra.mxu0 %v206
    %245 = vmatprep.subr.bf16.mxu0 0
    %246 = vmatpush1.bf16.msra.mxu0 %v205
    %247 = vmatprep.subr.bf16.mxu0 0
    %248 = vmatpush1.bf16.msra.mxu0 %v204
    %249 = vmatprep.subr.bf16.mxu0 0
    %250 = vmatpush1.bf16.msra.mxu0 %v203
    %251 = vmatprep.subr.bf16.mxu0 0
    %252 = vmatpush2.bf16.msra.mxu0 %v218
    %253 = vmatprep.subr.bf16.mxu0 0
    %254 = vmatpush2.bf16.msra.mxu0 %v217
    %255 = vmatprep.subr.bf16.mxu0 0
    %256 = vmatpush2.bf16.msra.mxu0 %v216
    %257 = vmatprep.subr.bf16.mxu0 0
    %258 = vmatpush2.bf16.msra.mxu0 %v215
    %259 = vmatprep.subr.bf16.mxu0 0
    %260 = vmatpush2.bf16.msra.mxu0 %v214
    %261 = vmatprep.subr.bf16.mxu0 0
    %262 = vmatpush2.bf16.msra.mxu0 %v213
    %263 = vmatprep.subr.bf16.mxu0 0
    %264 = vmatpush2.bf16.msra.mxu0 %v212
    %265 = vmatprep.subr.bf16.mxu0 0
    %266 = vmatpush2.bf16.msra.mxu0 %v211
    %267 = vmatprep.mubr.bf16.mxu0 %v136
    %268 = vmatmul.mubr.bf16.gmra.mxu0 %v135
    %v269 = vpop.f32.mrf.mxu0
    %v270 = vadd.f32 %v127, %v269
    %v271 = vpop.f32.mrf.mxu0
    %v272 = vpop.f32.mrf.mxu0
    %v273 = vadd.f32 %v127, %v272
    %v274 = vpop.f32.mrf.mxu0
    %275 = vdwg.mxu0
    %v276 = vmax.f32 %v270, 0.0
    %v277 = vmax.f32 %v273, 0.0
    %v278 = vrot.slane %v276, 4
    %v279 = vmax.f32 %v276, %v278
    %v280 = vrot.slane %v279, 2
    %v281 = vmax.f32 %v279, %v280
    %v282 = vrot.slane %v281, 1
    %v283 = vmax.f32 %v281, %v282
    %v284 = vrot.slane %v277, 4
    %v285 = vmax.f32 %v277, %v284
    %v286 = vrot.slane %v285, 2
    %v287 = vmax.f32 %v285, %v286
    %v288 = vrot.slane %v287, 1
    %v289 = vmax.f32 %v287, %v288
    %v290 = vpack.c.bf16 %v277, %v276
    %v291 = vld [vmem:[%s3] sm:$0xf]
    %v292 = vld [vmem:[%s3 + $0x4] sm:$0xf]
    %v293 = vld [vmem:[%s3 + $0x8] sm:$0xf]
    %v294 = vld [vmem:[%s3 + $0xc] sm:$0xf]
    %v295 = vld [vmem:[%s3 + $0x10] sm:$0xf]
    %v296 = vld [vmem:[%s3 + $0x14] sm:$0xf]
    %v297 = vld [vmem:[%s3 + $0x18] sm:$0xf]
    %v298 = vld [vmem:[%s3 + $0x1c] sm:$0xf]
    %v299 = vld [vmem:[%s3 + $0x20] sm:$0xf]
    %v300 = vld [vmem:[%s3 + $0x24] sm:$0xf]
    %v301 = vld [vmem:[%s3 + $0x28] sm:$0xf]
    %v302 = vld [vmem:[%s3 + $0x2c] sm:$0xf]
    %v303 = vld [vmem:[%s3 + $0x30] sm:$0xf]
    %v304 = vld [vmem:[%s3 + $0x34] sm:$0xf]
    %v305 = vld [vmem:[%s3 + $0x38] sm:$0xf]
    %v306 = vld [vmem:[%s3 + $0x3c] sm:$0xf]
    %v307 = vld [vmem:[%s4] sm:$0x1]
    %v309 = vlaneseq
    %v310 = vshrl.u32 %v309, 7
    %v311 = vsub.s32 0, %v310
    %v312 = vrot.slane %v307, %v311
    %v330 = vunpack.c.l.b16 %v291
    %v331 = vunpack.c.l.b16 %v292
    %v332 = vunpack.c.l.b16 %v293
    %v333 = vunpack.c.l.b16 %v294
    %v334 = vunpack.c.l.b16 %v295
    %v335 = vunpack.c.l.b16 %v296
    %v336 = vunpack.c.l.b16 %v297
    %v337 = vunpack.c.l.b16 %v298
    %v338 = vunpack.c.l.b16 %v299
    %v339 = vunpack.c.l.b16 %v300
    %v340 = vunpack.c.l.b16 %v301
    %v341 = vunpack.c.l.b16 %v302
    %v342 = vunpack.c.l.b16 %v303
    %v343 = vunpack.c.l.b16 %v304
    %v344 = vunpack.c.l.b16 %v305
    %v345 = vunpack.c.l.b16 %v306
    %v346 = vpack.c.b16 %v331, %v330
    %v347 = vpack.c.b16 %v333, %v332
    %v348 = vpack.c.b16 %v335, %v334
    %v349 = vpack.c.b16 %v337, %v336
    %v350 = vpack.c.b16 %v339, %v338
    %v351 = vpack.c.b16 %v341, %v340
    %v352 = vpack.c.b16 %v343, %v342
    %v353 = vpack.c.b16 %v345, %v344
    %362 = vmatprep.subr.bf16.mxu0 0
    %363 = vmatpush1.bf16.msra.mxu0 %v353
    %364 = vmatprep.subr.bf16.mxu0 0
    %365 = vmatpush1.bf16.msra.mxu0 %v352
    %366 = vmatprep.subr.bf16.mxu0 0
    %367 = vmatpush1.bf16.msra.mxu0 %v351
    %368 = vmatprep.subr.bf16.mxu0 0
    %369 = vmatpush1.bf16.msra.mxu0 %v350
    %370 = vmatprep.subr.bf16.mxu0 0
    %371 = vmatpush1.bf16.msra.mxu0 %v349
    %372 = vmatprep.subr.bf16.mxu0 0
    %373 = vmatpush1.bf16.msra.mxu0 %v348
    %374 = vmatprep.subr.bf16.mxu0 0
    %375 = vmatpush1.bf16.msra.mxu0 %v347
    %376 = vmatprep.subr.bf16.mxu0 0
    %377 = vmatpush1.bf16.msra.mxu0 %v346
    %378 = vmatprep.subr.bf16.mxu0 0
    %379 = vmatpush2.bf16.msra.mxu0 0
    %380 = vmatprep.subr.bf16.mxu0 0
    %381 = vmatpush2.bf16.msra.mxu0 0
    %382 = vmatprep.subr.bf16.mxu0 0
    %383 = vmatpush2.bf16.msra.mxu0 0
    %384 = vmatprep.subr.bf16.mxu0 0
    %385 = vmatpush2.bf16.msra.mxu0 0
    %386 = vmatprep.subr.bf16.mxu0 0
    %387 = vmatpush2.bf16.msra.mxu0 0
    %388 = vmatprep.subr.bf16.mxu0 0
    %389 = vmatpush2.bf16.msra.mxu0 0
    %390 = vmatprep.subr.bf16.mxu0 0
    %391 = vmatpush2.bf16.msra.mxu0 0
    %392 = vmatprep.subr.bf16.mxu0 0
    %393 = vmatpush2.bf16.msra.mxu0 0
    %394 = vmatprep.mubr.bf16.mxu0 0
    %395 = vmatmul.mubr.bf16.gmra.mxu0 %v290
    %v396 = vpop.f32.mrf.mxu0
    %v397 = vadd.f32 %v312, %v396
    %v398 = vpop.f32.mrf.mxu0
    %v399 = vpop.f32.mrf.mxu0
    %v400 = vadd.f32 %v312, %v399
    %v401 = vpop.f32.mrf.mxu0
    %402 = vdwg.mxu0
    %v403 = vmax.f32 %v397, 0.0
    %v404 = vmax.f32 %v400, 0.0
    %v405 = vrot.slane %v403, 4
    %v406 = vmax.f32 %v403, %v405
    %v407 = vrot.slane %v406, 2
    %v408 = vmax.f32 %v406, %v407
    %v409 = vrot.slane %v408, 1
    %v410 = vmax.f32 %v408, %v409
    %v411 = vrot.slane %v404, 4
    %v412 = vmax.f32 %v404, %v411
    %v413 = vrot.slane %v412, 2
    %v414 = vmax.f32 %v412, %v413
    %v415 = vrot.slane %v414, 1
    %v416 = vmax.f32 %v414, %v415
    %v417 = vadd.f32 %v283, %v410
    %v418 = vadd.f32 %v289, %v416
    %v419 = vpack.c.bf16 %v404, %v403
    %v420 = vld [vmem:[%s5] sm:$0xf]
    %v421 = vld [vmem:[%s5 + $0x4] sm:$0xf]
    %v422 = vld [vmem:[%s5 + $0x8] sm:$0xf]
    %v423 = vld [vmem:[%s5 + $0xc] sm:$0xf]
    %v424 = vld [vmem:[%s5 + $0x10] sm:$0xf]
    %v425 = vld [vmem:[%s5 + $0x14] sm:$0xf]
    %v426 = vld [vmem:[%s5 + $0x18] sm:$0xf]
    %v427 = vld [vmem:[%s5 + $0x1c] sm:$0xf]
    %v428 = vld [vmem:[%s5 + $0x20] sm:$0xf]
    %v429 = vld [vmem:[%s5 + $0x24] sm:$0xf]
    %v430 = vld [vmem:[%s5 + $0x28] sm:$0xf]
    %v431 = vld [vmem:[%s5 + $0x2c] sm:$0xf]
    %v432 = vld [vmem:[%s5 + $0x30] sm:$0xf]
    %v433 = vld [vmem:[%s5 + $0x34] sm:$0xf]
    %v434 = vld [vmem:[%s5 + $0x38] sm:$0xf]
    %v435 = vld [vmem:[%s5 + $0x3c] sm:$0xf]
    %v436 = vld [vmem:[%s6] sm:$0x1]
    %v438 = vlaneseq
    %v439 = vshrl.u32 %v438, 7
    %v440 = vsub.s32 0, %v439
    %v441 = vrot.slane %v436, %v440
    %v459 = vunpack.c.l.b16 %v420
    %v460 = vunpack.c.l.b16 %v421
    %v461 = vunpack.c.l.b16 %v422
    %v462 = vunpack.c.l.b16 %v423
    %v463 = vunpack.c.l.b16 %v424
    %v464 = vunpack.c.l.b16 %v425
    %v465 = vunpack.c.l.b16 %v426
    %v466 = vunpack.c.l.b16 %v427
    %v467 = vunpack.c.l.b16 %v428
    %v468 = vunpack.c.l.b16 %v429
    %v469 = vunpack.c.l.b16 %v430
    %v470 = vunpack.c.l.b16 %v431
    %v471 = vunpack.c.l.b16 %v432
    %v472 = vunpack.c.l.b16 %v433
    %v473 = vunpack.c.l.b16 %v434
    %v474 = vunpack.c.l.b16 %v435
    %v475 = vpack.c.b16 %v460, %v459
    %v476 = vpack.c.b16 %v462, %v461
    %v477 = vpack.c.b16 %v464, %v463
    %v478 = vpack.c.b16 %v466, %v465
    %v479 = vpack.c.b16 %v468, %v467
    %v480 = vpack.c.b16 %v470, %v469
    %v481 = vpack.c.b16 %v472, %v471
    %v482 = vpack.c.b16 %v474, %v473
    %491 = vmatprep.subr.bf16.mxu0 0
    %492 = vmatpush1.bf16.msra.mxu0 %v482
    %493 = vmatprep.subr.bf16.mxu0 0
    %494 = vmatpush1.bf16.msra.mxu0 %v481
    %495 = vmatprep.subr.bf16.mxu0 0
    %496 = vmatpush1.bf16.msra.mxu0 %v480
    %497 = vmatprep.subr.bf16.mxu0 0
    %498 = vmatpush1.bf16.msra.mxu0 %v479
    %499 = vmatprep.subr.bf16.mxu0 0
    %500 = vmatpush1.bf16.msra.mxu0 %v478
    %501 = vmatprep.subr.bf16.mxu0 0
    %502 = vmatpush1.bf16.msra.mxu0 %v477
    %503 = vmatprep.subr.bf16.mxu0 0
    %504 = vmatpush1.bf16.msra.mxu0 %v476
    %505 = vmatprep.subr.bf16.mxu0 0
    %506 = vmatpush1.bf16.msra.mxu0 %v475
    %507 = vmatprep.subr.bf16.mxu0 0
    %508 = vmatpush2.bf16.msra.mxu0 0
    %509 = vmatprep.subr.bf16.mxu0 0
    %510 = vmatpush2.bf16.msra.mxu0 0
    %511 = vmatprep.subr.bf16.mxu0 0
    %512 = vmatpush2.bf16.msra.mxu0 0
    %513 = vmatprep.subr.bf16.mxu0 0
    %514 = vmatpush2.bf16.msra.mxu0 0
    %515 = vmatprep.subr.bf16.mxu0 0
    %516 = vmatpush2.bf16.msra.mxu0 0
    %517 = vmatprep.subr.bf16.mxu0 0
    %518 = vmatpush2.bf16.msra.mxu0 0
    %519 = vmatprep.subr.bf16.mxu0 0
    %520 = vmatpush2.bf16.msra.mxu0 0
    %521 = vmatprep.subr.bf16.mxu0 0
    %522 = vmatpush2.bf16.msra.mxu0 0
    %523 = vmatprep.mubr.bf16.mxu0 0
    %524 = vmatmul.mubr.bf16.gmra.mxu0 %v419
    %v525 = vpop.f32.mrf.mxu0
    %v526 = vadd.f32 %v441, %v525
    %v527 = vpop.f32.mrf.mxu0
    %v528 = vpop.f32.mrf.mxu0
    %v529 = vadd.f32 %v441, %v528
    %v530 = vpop.f32.mrf.mxu0
    %531 = vdwg.mxu0
    %v532 = vmax.f32 %v526, 0.0
    %v533 = vmax.f32 %v529, 0.0
    %v534 = vrot.slane %v532, 4
    %v535 = vmax.f32 %v532, %v534
    %v536 = vrot.slane %v535, 2
    %v537 = vmax.f32 %v535, %v536
    %v538 = vrot.slane %v537, 1
    %v539 = vmax.f32 %v537, %v538
    %v540 = vrot.slane %v533, 4
    %v541 = vmax.f32 %v533, %v540
    %v542 = vrot.slane %v541, 2
    %v543 = vmax.f32 %v541, %v542
    %v544 = vrot.slane %v543, 1
    %v545 = vmax.f32 %v543, %v544
    %v546 = vadd.f32 %v417, %v539
    %v547 = vadd.f32 %v418, %v545
    %vm550 = vcmask 1041409
    %v551 = vsel %vm550, %v547, %v546
    %553 = vst [vmem:[#allocation6] sm:$0x3] %v551
    %s554 = smul.u32 0, 2
    %s555 = scalar_lea.vmem [#allocation2], %s554
    %556 = vst [vmem:[%s555] sm:$0x3] %v551
    // Predicated region
    $region72: #{res_pool_gcn_forward.1} parent=1 // pred_check
      %p557 = pneg %p38
    $region73: #{res_pool_gcn_forward.1} parent=1 // pred_check_branch
      %559 = sbr.rel (%p557) target = $region75
    $region74: #{res_pool_gcn_forward.1} parent=1 // pred_region
      %s560 = sld [smem:[#allocation5]]
      %s561 = smul.u32 2, 1
      %s562 = sshll.u32 %s561, 4
      %563 = dma.done [#allocation4], %s562
      %v564 = vld [vmem:[#allocation3] sm:$0x3]
      %v565 = vld [vmem:[#allocation2] sm:$0x3]
      %vm566 = vcmask 15360
      %v568 = vsel %vm566, %v564, 0
      %vm570 = vcmask 1041408
      %v572 = vsel %vm570, %v565, 0
      %574 = vmatprep.subr.mxu0 0.0
      %575 = vmatpush1.msra.mxu0 0.0
      %576 = vmatprep.subr.mxu0 0.0
      %577 = vmatpush1.msra.mxu0 0.0
      %578 = vmatprep.subr.mxu0 0.0
      %579 = vmatpush1.msra.mxu0 0.0
      %580 = vmatprep.subr.mxu0 0.0
      %581 = vmatpush1.msra.mxu0 0.0
      %582 = vmatprep.subr.mxu0 0.0
      %583 = vmatpush1.msra.mxu0 0.0
      %584 = vmatprep.subr.mxu0 0.0
      %585 = vmatpush1.msra.mxu0 0.0
      %586 = vmatprep.subr.mxu0 0.0
      %587 = vmatpush1.msra.mxu0 0.0
      %588 = vmatprep.subr.mxu0 0.0
      %589 = vmatpush1.msra.mxu0 0.0
      %590 = vmatprep.subr.mxu0 0.0
      %591 = vmatpush1.msra.mxu0 0.0
      %592 = vmatprep.subr.mxu0 0.0
      %593 = vmatpush1.msra.mxu0 0.0
      %594 = vmatprep.subr.mxu0 0.0
      %595 = vmatpush1.msra.mxu0 0.0
      %596 = vmatprep.subr.mxu0 0.0
      %597 = vmatpush1.msra.mxu0 0.0
      %598 = vmatprep.subr.mxu0 0.0
      %599 = vmatpush1.msra.mxu0 0.0
      %600 = vmatprep.subr.mxu0 0.0
      %601 = vmatpush1.msra.mxu0 0.0
      %602 = vmatprep.subr.mxu0 0.0
      %603 = vmatpush1.msra.mxu0 0.0
      %604 = vmatprep.subr.mxu0 0.0
      %605 = vmatpush1.msra.mxu0 %v572
      %606 = vmatprep.subr.mxu0 0.0
      %607 = vmatpush2.msra.mxu0 0.0
      %608 = vmatprep.subr.mxu0 0.0
      %609 = vmatpush2.msra.mxu0 0.0
      %610 = vmatprep.subr.mxu0 0.0
      %611 = vmatpush2.msra.mxu0 0.0
      %612 = vmatprep.subr.mxu0 0.0
      %613 = vmatpush2.msra.mxu0 0.0
      %614 = vmatprep.subr.mxu0 0.0
      %615 = vmatpush2.msra.mxu0 0.0
      %616 = vmatprep.subr.mxu0 0.0
      %617 = vmatpush2.msra.mxu0 0.0
      %618 = vmatprep.subr.mxu0 0.0
      %619 = vmatpush2.msra.mxu0 0.0
      %620 = vmatprep.subr.mxu0 0.0
      %621 = vmatpush2.msra.mxu0 0.0
      %622 = vmatprep.subr.mxu0 0.0
      %623 = vmatpush2.msra.mxu0 0.0
      %624 = vmatprep.subr.mxu0 0.0
      %625 = vmatpush2.msra.mxu0 0.0
      %626 = vmatprep.subr.mxu0 0.0
      %627 = vmatpush2.msra.mxu0 0.0
      %628 = vmatprep.subr.mxu0 0.0
      %629 = vmatpush2.msra.mxu0 0.0
      %630 = vmatprep.subr.mxu0 0.0
      %631 = vmatpush2.msra.mxu0 0.0
      %632 = vmatprep.subr.mxu0 0.0
      %633 = vmatpush2.msra.mxu0 0.0
      %634 = vmatprep.subr.mxu0 0.0
      %635 = vmatpush2.msra.mxu0 0.0
      %636 = vmatprep.subr.mxu0 0.0
      %637 = vmatpush2.msra.mxu0 0.0
      %638 = vmatprep.mubr.f32.mxu0 0.0
      %639 = vmatmul.mubr.f32.gmra.mxu0 %v568
      %v640 = vpop.f32.mrf.mxu0
      %v641 = vadd.f32 0.0, %v640
      %v642 = vpop.f32.mrf.mxu0
      %643 = vdwg.mxu0
      %v644 = vld [vmem:[%s8] sm:$0x1]
      %v646 = vlaneseq
      %v647 = vshrl.u32 %v646, 7
      %v648 = vsub.s32 0, %v647
      %v649 = vrot.slane %v644, %v648
      %v651 = vmul.f32 %v641, %v649
      %v652 = vsel %vm570, %v651, 0.0
      %653 = vadd.xlane.f32.xlu0 %v652
      %v654 = vpop.xlane.xlu0 %653
      %v655 = vstv %s560
      %v656 = vadd.f32 %v654, %v655
      %v657 = vxor.u32 %v656, 2147483648
      %v658 = vmul.f32 %v657, 1.442695
      %v659 = vpow.pop %v658
      %v660 = vadd.f32 %v659, 1.0
      %v661 = vrcp.pop %v660
      %v662 = vmul.f32 1.0, %v661
      %vm663 = vcmask 1024
      %664 = vst.msk [vmem:[%s10] sm:$0x3] %vm663, %v662
    $region75: #{res_pool_gcn_forward.1} parent=1 // pred_fallthru
      _
    // Predicated region
    $region76: #{res_pool_gcn_forward.1} parent=1 // pred_check
      _
    $region77: #{res_pool_gcn_forward.1} parent=1 // pred_check_branch
      %666 = sbr.rel (0) target = $region79
    $region78: #{res_pool_gcn_forward.1} parent=1 // pred_region
      _
    $region79: #{res_pool_gcn_forward.1} parent=1 // pred_fallthru
      _
    // Predicated region
    $region80: #{res_pool_gcn_forward.1} parent=1 // pred_check
      _
    $region81: #{res_pool_gcn_forward.1} parent=1 // pred_check_branch
      %668 = sbr.rel (0) target = $region83
    $region82: #{res_pool_gcn_forward.1} parent=1 // pred_region
      %s670 = ssub.s32 32, 32
      %671 = vsyncadd [#allocation7], %s670
      %s673 = sshll.u32 [#allocation6], 4
      %s674 = int_to_ptr.vmem [resolvable:$true] %s673
      %676 = dma.vmem_to_hbm [thread:$0]  %s674, 32, %s11, [#allocation7]
    $region83: #{res_pool_gcn_forward.1} parent=1 // pred_fallthru
      _
    // Predicated region
    $region84: #{res_pool_gcn_forward.1} parent=1 // pred_check
      _
    $region85: #{res_pool_gcn_forward.1} parent=1 // pred_check_branch
      %678 = sbr.rel (0) target = $region87
    $region86: #{res_pool_gcn_forward.1} parent=1 // pred_region
      _
    $region87: #{res_pool_gcn_forward.1} parent=1 // pred_fallthru
      _
    // Predicated region
    $region88: #{res_pool_gcn_forward.1} parent=1 // pred_check
      _
    $region89: #{res_pool_gcn_forward.1} parent=1 // pred_check_branch
      %680 = sbr.rel (0) target = $region91
    $region90: #{res_pool_gcn_forward.1} parent=1 // pred_region
      %681 = dma.done [#allocation7], 32
    $region91: #{res_pool_gcn_forward.1} parent=1 // pred_fallthru
      _
    %682 = vsyncpa [#allocation7], 1
  %683 = vsyncmov [#allocation4]
  %s684 = vpop.sfrf %683
  %p685 = scmp.eq.s32.totalorder %s684, 0
  %p686 = pneg %p685
  %688 = shalt.err (%p686)

</llo_original>
